<compile_context>
chip_gen: v6e
topology: v6e:2x2x1
jax: 0.10.0
libtpu: 0.0.40
codegen_flags: <defaults>
</compile_context>

<pallas_src>
import functools

import jax
import jax.numpy as jnp
from jax.experimental import pallas as pl
from jax.experimental.pallas import tpu as pltpu

NUM_FEATURES = 44  # data.iloc[:, :44]


# ---------------------------------------------------------------------------
# Fused Pallas kernel: conv1 -> conv2 -> conv3 -> fc1 -> fc2 -> sigmoid
# ---------------------------------------------------------------------------
def fused_gnn_kernel(a_ref, x_ref,
                     w1_ref, b1_ref, w2_ref, b2_ref, w3_ref, b3_ref,
                     wf1_ref, bf1_ref, wf2_ref, bf2_ref,
                     o_ref, h1w2_ref, h2w3_ref):
    s = pl.program_id(0)              # network stage (0,1,2)
    i = pl.program_id(1)              # node-row tile
    tm = o_ref.shape[0]
    row0 = pl.multiple_of(i * tm, tm)
    a = a_ref[...]                    # (tm, N_pad) bf16 row panel of A_hat

    @pl.when(s == 0)
    def _():
        # h1 = relu((A @ X) @ W1 + b1); stash (h1 @ W2) rows for stage 1.
        ax = jnp.dot(a, x_ref[...], preferred_element_type=jnp.float32)
        h1 = jnp.maximum(
            jnp.dot(ax.astype(jnp.bfloat16), w1_ref[...],
                    preferred_element_type=jnp.float32) + b1_ref[...], 0.0)
        h1w2_ref[pl.ds(row0, tm), :] = jnp.dot(
            h1.astype(jnp.bfloat16), w2_ref[...],
            preferred_element_type=jnp.float32).astype(jnp.bfloat16)

    @pl.when(s == 1)
    def _():
        # h2 = relu(A @ (H1 @ W2) + b2); stash (h2 @ W3) rows for stage 2.
        h2 = jnp.maximum(
            jnp.dot(a, h1w2_ref[...], preferred_element_type=jnp.float32)
            + b2_ref[...], 0.0)
        h2w3_ref[pl.ds(row0, tm), :] = jnp.dot(
            h2.astype(jnp.bfloat16), w3_ref[...],
            preferred_element_type=jnp.float32).astype(jnp.bfloat16)

    @pl.when(s == 2)
    def _():
        # h3 = relu(A @ (H2 @ W3) + b3), then fc1 / relu / fc2 / sigmoid.
        h3 = jnp.maximum(
            jnp.dot(a, h2w3_ref[...], preferred_element_type=jnp.float32)
            + b3_ref[...], 0.0)
        h4 = jnp.maximum(
            jnp.dot(h3.astype(jnp.bfloat16), wf1_ref[...],
                    preferred_element_type=jnp.float32) + bf1_ref[...], 0.0)
        z = jnp.dot(h4.astype(jnp.bfloat16), wf2_ref[...],
                    preferred_element_type=jnp.float32) + bf2_ref[...]
        o_ref[...] = jax.nn.sigmoid(z)   # lane-dense (tm, 128) store


# ---------------------------------------------------------------------------
# Wrapper
# ---------------------------------------------------------------------------
def _round_up(x, m):
    return (x + m - 1) // m * m


@functools.partial(jax.jit, static_argnames=("tm",))
def gnn_forward(params, x, a_hat, *, tm=256):
    n, f_in = x.shape
    tm = min(tm, _round_up(n, 8))
    n_pad = _round_up(n, tm)
    n_tiles = n_pad // tm

    # bf16 MXU operands (f32 accumulation inside the kernel); zero-pad rows so
    # N is a multiple of the row tile (padded nodes are isolated -> harmless).
    a_p = jnp.pad(a_hat, ((0, n_pad - n), (0, n_pad - n))).astype(jnp.bfloat16)
    x_p = jnp.pad(x, ((0, n_pad - n), (0, 0))).astype(jnp.bfloat16)

    w1 = params["conv1"]["w"].astype(jnp.bfloat16); b1 = params["conv1"]["b"]
    w2 = params["conv2"]["w"].astype(jnp.bfloat16); b2 = params["conv2"]["b"]
    w3 = params["conv3"]["w"].astype(jnp.bfloat16); b3 = params["conv3"]["b"]
    wf1 = params["fc1"]["w"].astype(jnp.bfloat16);  bf1 = params["fc1"]["b"]
    # Lane-dense head: pad fc2 (16 -> 1) to 128 output lanes with zeros; the
    # real logit is column 0 (sliced off below).
    wf2 = jnp.pad(params["fc2"]["w"], ((0, 0), (0, 127))).astype(jnp.bfloat16)
    bf2 = jnp.pad(params["fc2"]["b"], ((0, 0), (0, 127)))

    full = lambda s, i: (0, 0)   # resident operands (fetched once)
    row = lambda s, i: (i, 0)    # row-tiled operands

    weight_specs = [
        pl.BlockSpec(w1.shape, full), pl.BlockSpec(b1.shape, full),
        pl.BlockSpec(w2.shape, full), pl.BlockSpec(b2.shape, full),
        pl.BlockSpec(w3.shape, full), pl.BlockSpec(b3.shape, full),
        pl.BlockSpec(wf1.shape, full), pl.BlockSpec(bf1.shape, full),
        pl.BlockSpec(wf2.shape, full), pl.BlockSpec(bf2.shape, full),
    ]

    # VMEM budget: double-buffered A panel + resident X / scratch / out + slack.
    est = (2 * tm * n_pad * 2            # A_hat panels (bf16, double-buffered)
           + n_pad * 128 * 2             # X resident (lanes padded)
           + 2 * n_pad * 128 * 2         # two bf16 scratch buffers
           + 2 * tm * 128 * 4            # output blocks
           + (1 << 20))                  # weights + headroom
    vmem_limit = int(min(max(2 * est, 4 << 20), 62 << 20))

    out_pad = pl.pallas_call(
        fused_gnn_kernel,
        out_shape=jax.ShapeDtypeStruct((n_pad, 128), jnp.float32),
        grid_spec=pltpu.PrefetchScalarGridSpec(
            num_scalar_prefetch=0,
            grid=(3, n_tiles),
            in_specs=[pl.BlockSpec((tm, n_pad), row),       # A_hat row panel
                      pl.BlockSpec((n_pad, f_in), full)]    # X (resident)
                     + weight_specs,
            out_specs=pl.BlockSpec((tm, 128), row),
            scratch_shapes=[pltpu.VMEM((n_pad, 64), jnp.bfloat16),   # H1 @ W2
                            pltpu.VMEM((n_pad, 32), jnp.bfloat16)],  # H2 @ W3
        ),
        compiler_params=pltpu.CompilerParams(
            # Row tiles of later stages depend on *all* tiles of earlier stages
            # through VMEM scratch, so both axes must stay "arbitrary".
            dimension_semantics=("arbitrary", "arbitrary"),
            vmem_limit_bytes=vmem_limit,
        ),
    )(a_p, x_p, w1, b1, w2, b2, w3, b3, wf1, bf1, wf2, bf2)

    return out_pad[:n, :1]   # [N, 1] sigmoid probabilities


# ---------------------------------------------------------------------------
# Plain-JAX glue: normalized adjacency, params, f32 reference
# ---------------------------------------------------------------------------
def normalized_adjacency(edge_index, num_nodes):
    """Dense A_hat = D^-1/2 (A + I) D^-1/2 from a [2, E] edge_index."""
    src, dst = edge_index[0], edge_index[1]
    a = jnp.zeros((num_nodes, num_nodes), jnp.float32)
    a = a.at[dst, src].add(1.0)                      # message flows src -> dst
    a = a + jnp.eye(num_nodes, dtype=jnp.float32)    # self loops
    deg = jnp.sum(a, axis=1)
    d_inv_sqrt = jnp.where(deg > 0, 1.0 / jnp.sqrt(deg), 0.0)
    return a * d_inv_sqrt[:, None] * d_inv_sqrt[None, :]


def glorot(key, shape):
    fan_in, fan_out = shape
    limit = jnp.sqrt(6.0 / (fan_in + fan_out))
    return jax.random.uniform(key, shape, jnp.float32, -limit, limit)


def init_params(key):
    ks = jax.random.split(key, 5)
    dims = [(NUM_FEATURES, 128), (128, 64), (64, 32), (32, 16), (16, 1)]
    names = ["conv1", "conv2", "conv3", "fc1", "fc2"]
    params = {}
    for name, k, (di, do) in zip(names, ks, dims):
        params[name] = {"w": glorot(k, (di, do)),
                        "b": jnp.zeros((1, do), jnp.float32)}
    return params


def gnn_reference(params, x, a_hat):
    """Pure-JAX f32 reference of the same forward pass."""
    h = jax.nn.relu(a_hat @ (x @ params["conv1"]["w"]) + params["conv1"]["b"])
    h = jax.nn.relu(a_hat @ (h @ params["conv2"]["w"]) + params["conv2"]["b"])
    h = jax.nn.relu(a_hat @ (h @ params["conv3"]["w"]) + params["conv3"]["b"])
    h = jax.nn.relu(h @ params["fc1"]["w"] + params["fc1"]["b"])
    return jax.nn.sigmoid(h @ params["fc2"]["w"] + params["fc2"]["b"])


# ---------------------------------------------------------------------------
if __name__ == "__main__":
    key = jax.random.PRNGKey(0)
    k_x, k_params = jax.random.split(key)

    N = 16  # number of graph nodes ("stocks")
    x = jax.random.normal(k_x, (N, NUM_FEATURES), jnp.float32)

    # Deterministic synthetic graph: bidirectional ring.
    src = jnp.arange(N, dtype=jnp.int32)
    dst = (src + 1) % N
    edge_index = jnp.stack(
        [jnp.concatenate([src, dst]), jnp.concatenate([dst, src])], axis=0
    )  # [2, 2N]

    a_hat = normalized_adjacency(edge_index, N)
    params = init_params(k_params)

    out = gnn_forward(params, x, a_hat)
    out = jax.block_until_ready(out)

    ref = gnn_reference(params, x, a_hat)

    assert out.shape == (N, 1)
    assert bool(jnp.all((out >= 0.0) & (out <= 1.0)))
    assert float(jnp.max(jnp.abs(out - ref))) < 5e-2  # bf16 MXU drift tolerance
    print("KERNEL_OK")
</pallas_src>

<mosaic_0001>
module attributes {stable_mosaic.version = 11 : i64} {
  func.func @fused_gnn_kernel(%arg0: i32, %arg1: i32, %arg2: memref<16x16xbf16, #tpu.memory_space<vmem>>, %arg3: memref<16x44xbf16, #tpu.memory_space<vmem>>, %arg4: memref<44x128xbf16, #tpu.memory_space<vmem>>, %arg5: memref<1x128xf32, #tpu.memory_space<vmem>>, %arg6: memref<128x64xbf16, #tpu.memory_space<vmem>>, %arg7: memref<1x64xf32, #tpu.memory_space<vmem>>, %arg8: memref<64x32xbf16, #tpu.memory_space<vmem>>, %arg9: memref<1x32xf32, #tpu.memory_space<vmem>>, %arg10: memref<32x16xbf16, #tpu.memory_space<vmem>>, %arg11: memref<1x16xf32, #tpu.memory_space<vmem>>, %arg12: memref<16x128xbf16, #tpu.memory_space<vmem>>, %arg13: memref<1x128xf32, #tpu.memory_space<vmem>>, %arg14: memref<16x128xf32, #tpu.memory_space<vmem>>, %arg15: memref<16x64xbf16, #tpu.memory_space<vmem>>, %arg16: memref<16x32xbf16, #tpu.memory_space<vmem>>) attributes {dimension_semantics = [#tpu.dimension_semantics<arbitrary>, #tpu.dimension_semantics<arbitrary>], iteration_bounds = array<i64: 3, 1>, scalar_prefetch = 0 : i64, scratch_operands = 2 : i64, tpu.core_type = #tpu.core_type<tc>, window_params = [{transform_indices = @transform_0, window_bounds = array<i64: 16, 16>}, {pipeline_mode = #tpu.pipeline_mode<synchronous>, transform_indices = @transform_1, window_bounds = array<i64: 16, 44>}, {pipeline_mode = #tpu.pipeline_mode<synchronous>, transform_indices = @transform_2, window_bounds = array<i64: 44, 128>}, {pipeline_mode = #tpu.pipeline_mode<synchronous>, transform_indices = @transform_3, window_bounds = array<i64: 1, 128>}, {pipeline_mode = #tpu.pipeline_mode<synchronous>, transform_indices = @transform_4, window_bounds = array<i64: 128, 64>}, {pipeline_mode = #tpu.pipeline_mode<synchronous>, transform_indices = @transform_5, window_bounds = array<i64: 1, 64>}, {pipeline_mode = #tpu.pipeline_mode<synchronous>, transform_indices = @transform_6, window_bounds = array<i64: 64, 32>}, {pipeline_mode = #tpu.pipeline_mode<synchronous>, transform_indices = @transform_7, window_bounds = array<i64: 1, 32>}, {pipeline_mode = #tpu.pipeline_mode<synchronous>, transform_indices = @transform_8, window_bounds = array<i64: 32, 16>}, {pipeline_mode = #tpu.pipeline_mode<synchronous>, transform_indices = @transform_9, window_bounds = array<i64: 1, 16>}, {pipeline_mode = #tpu.pipeline_mode<synchronous>, transform_indices = @transform_10, window_bounds = array<i64: 16, 128>}, {pipeline_mode = #tpu.pipeline_mode<synchronous>, transform_indices = @transform_11, window_bounds = array<i64: 1, 128>}, {transform_indices = @transform_12, window_bounds = array<i64: 16, 128>}]} {
    %c16_i32 = arith.constant 16 : i32
    %0 = arith.muli %arg1, %c16_i32 : i32
    %1 = tpu.assume_multiple %0, 16 : i32
    %c0 = arith.constant 0 : index
    %c0_0 = arith.constant 0 : index
    %2 = vector.load %arg2[%c0, %c0_0] : memref<16x16xbf16, #tpu.memory_space<vmem>>, vector<16x16xbf16>
    %c0_i32 = arith.constant 0 : i32
    %3 = arith.cmpi eq, %arg0, %c0_i32 : i32
    %4 = arith.extui %3 : i1 to i32
    %c0_i32_1 = arith.constant 0 : i32
    %5 = arith.cmpi ne, %4, %c0_i32_1 : i32
    scf.if %5 {
      %c0_4 = arith.constant 0 : index
      %c0_5 = arith.constant 0 : index
      %12 = vector.load %arg3[%c0_4, %c0_5] : memref<16x44xbf16, #tpu.memory_space<vmem>>, vector<16x44xbf16>
      %cst = arith.constant dense<0.000000e+00> : vector<16x44xf32>
      %13 = tpu.matmul %2, %12, %cst {dimension_numbers = #tpu.dot_dimension_numbers<[1], [0], [0], [1], [0, 0, 1, 1], [], []>} : vector<16x16xbf16>, vector<16x44xbf16>, vector<16x44xf32> -> vector<16x44xf32>
      %14 = arith.truncf %13 : vector<16x44xf32> to vector<16x44xbf16>
      %c0_6 = arith.constant 0 : index
      %c0_7 = arith.constant 0 : index
      %15 = vector.load %arg4[%c0_6, %c0_7] : memref<44x128xbf16, #tpu.memory_space<vmem>>, vector<44x128xbf16>
      %cst_8 = arith.constant dense<0.000000e+00> : vector<16x128xf32>
      %16 = tpu.matmul %14, %15, %cst_8 {dimension_numbers = #tpu.dot_dimension_numbers<[1], [0], [0], [1], [0, 0, 1, 1], [], []>} : vector<16x44xbf16>, vector<44x128xbf16>, vector<16x128xf32> -> vector<16x128xf32>
      %c0_9 = arith.constant 0 : index
      %c0_10 = arith.constant 0 : index
      %17 = vector.load %arg5[%c0_9, %c0_10] : memref<1x128xf32, #tpu.memory_space<vmem>>, vector<1x128xf32>
      %18 = vector.broadcast %17 : vector<1x128xf32> to vector<16x128xf32>
      %19 = arith.addf %16, %18 : vector<16x128xf32>
      %cst_11 = arith.constant 0.000000e+00 : f32
      %20 = vector.broadcast %cst_11 : f32 to vector<16x128xf32>
      %21 = arith.maximumf %19, %20 : vector<16x128xf32>
      %22 = arith.truncf %21 : vector<16x128xf32> to vector<16x128xbf16>
      %c0_12 = arith.constant 0 : index
      %c0_13 = arith.constant 0 : index
      %23 = vector.load %arg6[%c0_12, %c0_13] : memref<128x64xbf16, #tpu.memory_space<vmem>>, vector<128x64xbf16>
      %cst_14 = arith.constant dense<0.000000e+00> : vector<16x64xf32>
      %24 = tpu.matmul %22, %23, %cst_14 {dimension_numbers = #tpu.dot_dimension_numbers<[1], [0], [0], [1], [0, 0, 1, 1], [], []>} : vector<16x128xbf16>, vector<128x64xbf16>, vector<16x64xf32> -> vector<16x64xf32>
      %25 = arith.truncf %24 : vector<16x64xf32> to vector<16x64xbf16>
      %26 = arith.index_cast %1 : i32 to index
      %c0_15 = arith.constant 0 : index
      %27 = vector.load %arg15[%26, %c0_15] : memref<16x64xbf16, #tpu.memory_space<vmem>>, vector<16x64xbf16>
      tpu.vector_store %arg15[%26, %c0_15], %25 {strides = array<i32>} : memref<16x64xbf16, #tpu.memory_space<vmem>>, vector<16x64xbf16>,
    } else {
    }
    %c1_i32 = arith.constant 1 : i32
    %6 = arith.cmpi eq, %arg0, %c1_i32 : i32
    %7 = arith.extui %6 : i1 to i32
    %c0_i32_2 = arith.constant 0 : i32
    %8 = arith.cmpi ne, %7, %c0_i32_2 : i32
    scf.if %8 {
      %c0_4 = arith.constant 0 : index
      %c0_5 = arith.constant 0 : index
      %12 = vector.load %arg15[%c0_4, %c0_5] : memref<16x64xbf16, #tpu.memory_space<vmem>>, vector<16x64xbf16>
      %cst = arith.constant dense<0.000000e+00> : vector<16x64xf32>
      %13 = tpu.matmul %2, %12, %cst {dimension_numbers = #tpu.dot_dimension_numbers<[1], [0], [0], [1], [0, 0, 1, 1], [], []>} : vector<16x16xbf16>, vector<16x64xbf16>, vector<16x64xf32> -> vector<16x64xf32>
      %c0_6 = arith.constant 0 : index
      %c0_7 = arith.constant 0 : index
      %14 = vector.load %arg7[%c0_6, %c0_7] : memref<1x64xf32, #tpu.memory_space<vmem>>, vector<1x64xf32>
      %15 = vector.broadcast %14 : vector<1x64xf32> to vector<16x64xf32>
      %16 = arith.addf %13, %15 : vector<16x64xf32>
      %cst_8 = arith.constant 0.000000e+00 : f32
      %17 = vector.broadcast %cst_8 : f32 to vector<16x64xf32>
      %18 = arith.maximumf %16, %17 : vector<16x64xf32>
      %19 = arith.truncf %18 : vector<16x64xf32> to vector<16x64xbf16>
      %c0_9 = arith.constant 0 : index
      %c0_10 = arith.constant 0 : index
      %20 = vector.load %arg8[%c0_9, %c0_10] : memref<64x32xbf16, #tpu.memory_space<vmem>>, vector<64x32xbf16>
      %cst_11 = arith.constant dense<0.000000e+00> : vector<16x32xf32>
      %21 = tpu.matmul %19, %20, %cst_11 {dimension_numbers = #tpu.dot_dimension_numbers<[1], [0], [0], [1], [0, 0, 1, 1], [], []>} : vector<16x64xbf16>, vector<64x32xbf16>, vector<16x32xf32> -> vector<16x32xf32>
      %22 = arith.truncf %21 : vector<16x32xf32> to vector<16x32xbf16>
      %23 = arith.index_cast %1 : i32 to index
      %c0_12 = arith.constant 0 : index
      %24 = vector.load %arg16[%23, %c0_12] : memref<16x32xbf16, #tpu.memory_space<vmem>>, vector<16x32xbf16>
      tpu.vector_store %arg16[%23, %c0_12], %22 {strides = array<i32>} : memref<16x32xbf16, #tpu.memory_space<vmem>>, vector<16x32xbf16>,
    } else {
    }
    %c2_i32 = arith.constant 2 : i32
    %9 = arith.cmpi eq, %arg0, %c2_i32 : i32
    %10 = arith.extui %9 : i1 to i32
    %c0_i32_3 = arith.constant 0 : i32
    %11 = arith.cmpi ne, %10, %c0_i32_3 : i32
    scf.if %11 {
      %c0_4 = arith.constant 0 : index
      %c0_5 = arith.constant 0 : index
      %12 = vector.load %arg16[%c0_4, %c0_5] : memref<16x32xbf16, #tpu.memory_space<vmem>>, vector<16x32xbf16>
      %cst = arith.constant dense<0.000000e+00> : vector<16x32xf32>
      %13 = tpu.matmul %2, %12, %cst {dimension_numbers = #tpu.dot_dimension_numbers<[1], [0], [0], [1], [0, 0, 1, 1], [], []>} : vector<16x16xbf16>, vector<16x32xbf16>, vector<16x32xf32> -> vector<16x32xf32>
      %c0_6 = arith.constant 0 : index
      %c0_7 = arith.constant 0 : index
      %14 = vector.load %arg9[%c0_6, %c0_7] : memref<1x32xf32, #tpu.memory_space<vmem>>, vector<1x32xf32>
      %15 = vector.broadcast %14 : vector<1x32xf32> to vector<16x32xf32>
      %16 = arith.addf %13, %15 : vector<16x32xf32>
      %cst_8 = arith.constant 0.000000e+00 : f32
      %17 = vector.broadcast %cst_8 : f32 to vector<16x32xf32>
      %18 = arith.maximumf %16, %17 : vector<16x32xf32>
      %19 = arith.truncf %18 : vector<16x32xf32> to vector<16x32xbf16>
      %c0_9 = arith.constant 0 : index
      %c0_10 = arith.constant 0 : index
      %20 = vector.load %arg10[%c0_9, %c0_10] : memref<32x16xbf16, #tpu.memory_space<vmem>>, vector<32x16xbf16>
      %cst_11 = arith.constant dense<0.000000e+00> : vector<16x16xf32>
      %21 = tpu.matmul %19, %20, %cst_11 {dimension_numbers = #tpu.dot_dimension_numbers<[1], [0], [0], [1], [0, 0, 1, 1], [], []>} : vector<16x32xbf16>, vector<32x16xbf16>, vector<16x16xf32> -> vector<16x16xf32>
      %c0_12 = arith.constant 0 : index
      %c0_13 = arith.constant 0 : index
      %22 = vector.load %arg11[%c0_12, %c0_13] : memref<1x16xf32, #tpu.memory_space<vmem>>, vector<1x16xf32>
      %23 = vector.broadcast %22 : vector<1x16xf32> to vector<16x16xf32>
      %24 = arith.addf %21, %23 : vector<16x16xf32>
      %cst_14 = arith.constant 0.000000e+00 : f32
      %25 = vector.broadcast %cst_14 : f32 to vector<16x16xf32>
      %26 = arith.maximumf %24, %25 : vector<16x16xf32>
      %27 = arith.truncf %26 : vector<16x16xf32> to vector<16x16xbf16>
      %c0_15 = arith.constant 0 : index
      %c0_16 = arith.constant 0 : index
      %28 = vector.load %arg12[%c0_15, %c0_16] : memref<16x128xbf16, #tpu.memory_space<vmem>>, vector<16x128xbf16>
      %cst_17 = arith.constant dense<0.000000e+00> : vector<16x128xf32>
      %29 = tpu.matmul %27, %28, %cst_17 {dimension_numbers = #tpu.dot_dimension_numbers<[1], [0], [0], [1], [0, 0, 1, 1], [], []>} : vector<16x16xbf16>, vector<16x128xbf16>, vector<16x128xf32> -> vector<16x128xf32>
      %c0_18 = arith.constant 0 : index
      %c0_19 = arith.constant 0 : index
      %30 = vector.load %arg13[%c0_18, %c0_19] : memref<1x128xf32, #tpu.memory_space<vmem>>, vector<1x128xf32>
      %31 = vector.broadcast %30 : vector<1x128xf32> to vector<16x128xf32>
      %32 = arith.addf %29, %31 : vector<16x128xf32>
      %33 = arith.negf %32 : vector<16x128xf32>
      %34 = math.exp %33 : vector<16x128xf32>
      %cst_20 = arith.constant 1.000000e+00 : f32
      %35 = vector.broadcast %cst_20 : f32 to vector<16x128xf32>
      %36 = arith.addf %35, %34 : vector<16x128xf32>
      %37 = arith.divf %35, %36 : vector<16x128xf32>
      %c0_21 = arith.constant 0 : index
      %c0_22 = arith.constant 0 : index
      %38 = vector.load %arg14[%c0_21, %c0_22] : memref<16x128xf32, #tpu.memory_space<vmem>>, vector<16x128xf32>
      tpu.vector_store %arg14[%c0_21, %c0_22], %37 {strides = array<i32>} : memref<16x128xf32, #tpu.memory_space<vmem>>, vector<16x128xf32>,
    } else {
    }
    return
  }
  func.func @transform_0(%arg0: i32, %arg1: i32) -> (i32, i32) {
    %c0_i32 = arith.constant 0 : i32
    %c0_i32_0 = arith.constant 0 : i32
    return %arg1, %c0_i32 : i32, i32
  }
  func.func @transform_1(%arg0: i32, %arg1: i32) -> (i32, i32) {
    %c0_i32 = arith.constant 0 : i32
    %c0_i32_0 = arith.constant 0 : i32
    %c0_i32_1 = arith.constant 0 : i32
    return %c0_i32, %c0_i32_0 : i32, i32
  }
  func.func @transform_2(%arg0: i32, %arg1: i32) -> (i32, i32) {
    %c0_i32 = arith.constant 0 : i32
    %c0_i32_0 = arith.constant 0 : i32
    %c0_i32_1 = arith.constant 0 : i32
    return %c0_i32, %c0_i32_0 : i32, i32
  }
  func.func @transform_3(%arg0: i32, %arg1: i32) -> (i32, i32) {
    %c0_i32 = arith.constant 0 : i32
    %c0_i32_0 = arith.constant 0 : i32
    %c0_i32_1 = arith.constant 0 : i32
    return %c0_i32, %c0_i32_0 : i32, i32
  }
  func.func @transform_4(%arg0: i32, %arg1: i32) -> (i32, i32) {
    %c0_i32 = arith.constant 0 : i32
    %c0_i32_0 = arith.constant 0 : i32
    %c0_i32_1 = arith.constant 0 : i32
    return %c0_i32, %c0_i32_0 : i32, i32
  }
  func.func @transform_5(%arg0: i32, %arg1: i32) -> (i32, i32) {
    %c0_i32 = arith.constant 0 : i32
    %c0_i32_0 = arith.constant 0 : i32
    %c0_i32_1 = arith.constant 0 : i32
    return %c0_i32, %c0_i32_0 : i32, i32
  }
  func.func @transform_6(%arg0: i32, %arg1: i32) -> (i32, i32) {
    %c0_i32 = arith.constant 0 : i32
    %c0_i32_0 = arith.constant 0 : i32
    %c0_i32_1 = arith.constant 0 : i32
    return %c0_i32, %c0_i32_0 : i32, i32
  }
  func.func @transform_7(%arg0: i32, %arg1: i32) -> (i32, i32) {
    %c0_i32 = arith.constant 0 : i32
    %c0_i32_0 = arith.constant 0 : i32
    %c0_i32_1 = arith.constant 0 : i32
    return %c0_i32, %c0_i32_0 : i32, i32
  }
  func.func @transform_8(%arg0: i32, %arg1: i32) -> (i32, i32) {
    %c0_i32 = arith.constant 0 : i32
    %c0_i32_0 = arith.constant 0 : i32
    %c0_i32_1 = arith.constant 0 : i32
    return %c0_i32, %c0_i32_0 : i32, i32
  }
  func.func @transform_9(%arg0: i32, %arg1: i32) -> (i32, i32) {
    %c0_i32 = arith.constant 0 : i32
    %c0_i32_0 = arith.constant 0 : i32
    %c0_i32_1 = arith.constant 0 : i32
    return %c0_i32, %c0_i32_0 : i32, i32
  }
  func.func @transform_10(%arg0: i32, %arg1: i32) -> (i32, i32) {
    %c0_i32 = arith.constant 0 : i32
    %c0_i32_0 = arith.constant 0 : i32
    %c0_i32_1 = arith.constant 0 : i32
    return %c0_i32, %c0_i32_0 : i32, i32
  }
  func.func @transform_11(%arg0: i32, %arg1: i32) -> (i32, i32) {
    %c0_i32 = arith.constant 0 : i32
    %c0_i32_0 = arith.constant 0 : i32
    %c0_i32_1 = arith.constant 0 : i32
    return %c0_i32, %c0_i32_0 : i32, i32
  }
  func.func @transform_12(%arg0: i32, %arg1: i32) -> (i32, i32) {
    %c0_i32 = arith.constant 0 : i32
    %c0_i32_0 = arith.constant 0 : i32
    return %arg1, %c0_i32 : i32, i32
  }
}

</mosaic_0001>

<llo_original>
// kernel: gnn_forward.1
$region0: #{gnn_forward.1}
  #allocation0 [shape = 'u32[]', space=smem, size = 0x4, offset = 0x4, fixed_abs, tag = 'smem constant byte address 0x4 - core index']
  #allocation1 [shape = 'u32[144,128]{1,0:T(1,128)}', space=vmem, size = 0x12000, scoped, tag = 'internal scratch']
  #allocation2 [shape = 'bf16[16,64]{1,0:T(8,128)(2,1)}', space=vmem, size = 0x1000, scoped, tag = 'scratch operand']
  #allocation3 [shape = 'bf16[16,32]{1,0:T(8,128)(2,1)}', space=vmem, size = 0x1000, scoped, tag = 'scratch operand']
  %s0 = inlined_call_operand.vmem [shape: bf16[16,16], index: 0, kind: input, shape index: {}]
  %s1 = inlined_call_operand.vmem [shape: bf16[16,44], index: 1, kind: input, shape index: {}]
  %s2 = inlined_call_operand.vmem [shape: bf16[44,128], index: 2, kind: input, shape index: {}]
  %s3 = inlined_call_operand.vmem [shape: f32[1,128], index: 3, kind: input, shape index: {}]
  %s4 = inlined_call_operand.vmem [shape: bf16[128,64], index: 4, kind: input, shape index: {}]
  %s5 = inlined_call_operand.vmem [shape: f32[1,64], index: 5, kind: input, shape index: {}]
  %s6 = inlined_call_operand.vmem [shape: bf16[64,32], index: 6, kind: input, shape index: {}]
  %s7 = inlined_call_operand.vmem [shape: f32[1,32], index: 7, kind: input, shape index: {}]
  %s8 = inlined_call_operand.vmem [shape: bf16[32,16], index: 8, kind: input, shape index: {}]
  %s9 = inlined_call_operand.vmem [shape: f32[1,16], index: 9, kind: input, shape index: {}]
  %s10 = inlined_call_operand.vmem [shape: bf16[16,128], index: 10, kind: input, shape index: {}]
  %s11 = inlined_call_operand.vmem [shape: f32[1,128], index: 11, kind: input, shape index: {}]
  %s12 = inlined_call_operand.vmem [shape: f32[16,128], index: 12, kind: output, shape index: {}]
  %s13 = sld [smem:[#allocation0]]
  $region93: #{gnn_forward.1} parent=0
    _
  %s15 = ssub.s32 1, %s13
  %s16 = scalar_select 0, %s15, %s13
  loop: start=0, step=1, limit=5
  $region2: #{gnn_forward.1} parent=0 // loop_pre_header
    _
  $region3: #{gnn_forward.1} parent=0 // loop_header
    %s18 = sphi 0, %s22
    %p19 = scmp.ge.s32.totalorder %s18, 5
    %s25 = sphi 0, %s37
    %s26 = sphi 0, %s33
    %s27 = sphi 0, %s25
    %s28 = sphi 0, %s26
    %s29 = sphi 0, %s27
    %s30 = sphi 0, %s28
    %s40 = sphi 0, %s42
    %s43 = sphi 0, %s40
    %s44 = sphi 0, %s43
    %s60 = sphi 0, %s44
    %s64 = sphi 0, %s64
    %s66 = sphi 0, %s64
    %s67 = sphi 0, %s66
    %s81 = sphi 0, %s67
    %s85 = sphi 0, %s85
    %s87 = sphi 0, %s85
    %s88 = sphi 0, %s87
    %s102 = sphi 0, %s88
    %s106 = sphi 0, %s106
    %s108 = sphi 0, %s106
    %s109 = sphi 0, %s108
    %s123 = sphi 0, %s109
    %s127 = sphi 0, %s127
    %s129 = sphi 0, %s127
    %s130 = sphi 0, %s129
    %s144 = sphi 0, %s130
    %s148 = sphi 0, %s148
    %s150 = sphi 0, %s148
    %s151 = sphi 0, %s150
    %s165 = sphi 0, %s151
    %s169 = sphi 0, %s169
    %s171 = sphi 0, %s169
    %s172 = sphi 0, %s171
    %s186 = sphi 0, %s172
    %s190 = sphi 0, %s190
    %s192 = sphi 0, %s190
    %s193 = sphi 0, %s192
    %s207 = sphi 0, %s193
    %s211 = sphi 0, %s211
    %s213 = sphi 0, %s211
    %s214 = sphi 0, %s213
    %s228 = sphi 0, %s214
    %s232 = sphi 0, %s232
    %s234 = sphi 0, %s232
    %s235 = sphi 0, %s234
    %s249 = sphi 0, %s235
    %s253 = sphi 0, %s253
    %s255 = sphi 0, %s253
    %s256 = sphi 0, %s255
    %s270 = sphi 0, %s256
    %s274 = sphi 0, %s274
    %s276 = sphi 0, %s274
    %s277 = sphi 0, %s276
    %s291 = sphi 0, %s277
    %s297 = sphi 0, %s299
    %s300 = sphi 0, %s297
    %s301 = sphi 0, %s300
    %s317 = sphi 0, %s301
  $region4: #{gnn_forward.1} parent=0 // loop_header_branch
    %21 = sbr.rel (%p19) target = $region8
  $region5: #{gnn_forward.1} parent=0 // loop_body
    %s23 = ssub.s32 %s18, 1
    %s24 = ssub.s32 %s18, 2
    %s31 = sadd.s32 1, %s26
    %p32 = scmp.ge.s32.totalorder %s31, 1
    %s33 = scalar_select %p32, 0, %s31
    %s34 = sadd.s32 1, %s25
    %s35 = scalar_select %p32, %s34, %s25
    %p36 = scmp.ge.s32.totalorder %s35, 3
    %s37 = scalar_select %p36, 0, %s35
    %s38 = ssub.s32 %s26, %s33
    %p39 = scmp.eq.s32.totalorder %s38, 0
    %s41 = sadd.s32 %s40, 1
    %s42 = scalar_select %p39, %s40, %s41
    %p45 = pneg %p39
    %p46 = scmp.eq.s32.totalorder %s18, 2
    %p47 = por %p45, %p46
    %p48 = scmp.ne.s32.totalorder %s40, %s43
    %p49 = scmp.eq.s32.totalorder %s18, 0
    %p50 = por %p48, %p49
    %p51 = scmp.ne.s32.totalorder %s40, %s43
    %p52 = scmp.eq.s32.totalorder %s23, 2
    %p53 = por %p51, %p52
    %p54 = scmp.ne.s32.totalorder %s43, %s44
    %p55 = scmp.eq.s32.totalorder %s23, 0
    %p56 = por %p54, %p55
    %p57 = scmp.ne.s32.totalorder %s43, %s44
    %p58 = scmp.eq.s32.totalorder %s24, 2
    %p59 = por %p57, %p58
    %p61 = scmp.ne.s32.totalorder %s44, %s60
    %p62 = scmp.eq.s32.totalorder %s24, 0
    %p63 = por %p61, %p62
    %s65 = sadd.s32 %s64, 1
    %p68 = scmp.eq.s32.totalorder %s18, 2
    %p69 = scmp.ne.s32.totalorder %s64, %s66
    %p70 = scmp.eq.s32.totalorder %s18, 0
    %p71 = por %p69, %p70
    %p72 = scmp.ne.s32.totalorder %s64, %s66
    %p73 = scmp.eq.s32.totalorder %s23, 2
    %p74 = por %p72, %p73
    %p75 = scmp.ne.s32.totalorder %s66, %s67
    %p76 = scmp.eq.s32.totalorder %s23, 0
    %p77 = por %p75, %p76
    %p78 = scmp.ne.s32.totalorder %s66, %s67
    %p79 = scmp.eq.s32.totalorder %s24, 2
    %p80 = por %p78, %p79
    %p82 = scmp.ne.s32.totalorder %s67, %s81
    %p83 = scmp.eq.s32.totalorder %s24, 0
    %p84 = por %p82, %p83
    %s86 = sadd.s32 %s85, 1
    %p89 = scmp.eq.s32.totalorder %s18, 2
    %p90 = scmp.ne.s32.totalorder %s85, %s87
    %p91 = scmp.eq.s32.totalorder %s18, 0
    %p92 = por %p90, %p91
    %p93 = scmp.ne.s32.totalorder %s85, %s87
    %p94 = scmp.eq.s32.totalorder %s23, 2
    %p95 = por %p93, %p94
    %p96 = scmp.ne.s32.totalorder %s87, %s88
    %p97 = scmp.eq.s32.totalorder %s23, 0
    %p98 = por %p96, %p97
    %p99 = scmp.ne.s32.totalorder %s87, %s88
    %p100 = scmp.eq.s32.totalorder %s24, 2
    %p101 = por %p99, %p100
    %p103 = scmp.ne.s32.totalorder %s88, %s102
    %p104 = scmp.eq.s32.totalorder %s24, 0
    %p105 = por %p103, %p104
    %s107 = sadd.s32 %s106, 1
    %p110 = scmp.eq.s32.totalorder %s18, 2
    %p111 = scmp.ne.s32.totalorder %s106, %s108
    %p112 = scmp.eq.s32.totalorder %s18, 0
    %p113 = por %p111, %p112
    %p114 = scmp.ne.s32.totalorder %s106, %s108
    %p115 = scmp.eq.s32.totalorder %s23, 2
    %p116 = por %p114, %p115
    %p117 = scmp.ne.s32.totalorder %s108, %s109
    %p118 = scmp.eq.s32.totalorder %s23, 0
    %p119 = por %p117, %p118
    %p120 = scmp.ne.s32.totalorder %s108, %s109
    %p121 = scmp.eq.s32.totalorder %s24, 2
    %p122 = por %p120, %p121
    %p124 = scmp.ne.s32.totalorder %s109, %s123
    %p125 = scmp.eq.s32.totalorder %s24, 0
    %p126 = por %p124, %p125
    %s128 = sadd.s32 %s127, 1
    %p131 = scmp.eq.s32.totalorder %s18, 2
    %p132 = scmp.ne.s32.totalorder %s127, %s129
    %p133 = scmp.eq.s32.totalorder %s18, 0
    %p134 = por %p132, %p133
    %p135 = scmp.ne.s32.totalorder %s127, %s129
    %p136 = scmp.eq.s32.totalorder %s23, 2
    %p137 = por %p135, %p136
    %p138 = scmp.ne.s32.totalorder %s129, %s130
    %p139 = scmp.eq.s32.totalorder %s23, 0
    %p140 = por %p138, %p139
    %p141 = scmp.ne.s32.totalorder %s129, %s130
    %p142 = scmp.eq.s32.totalorder %s24, 2
    %p143 = por %p141, %p142
    %p145 = scmp.ne.s32.totalorder %s130, %s144
    %p146 = scmp.eq.s32.totalorder %s24, 0
    %p147 = por %p145, %p146
    %s149 = sadd.s32 %s148, 1
    %p152 = scmp.eq.s32.totalorder %s18, 2
    %p153 = scmp.ne.s32.totalorder %s148, %s150
    %p154 = scmp.eq.s32.totalorder %s18, 0
    %p155 = por %p153, %p154
    %p156 = scmp.ne.s32.totalorder %s148, %s150
    %p157 = scmp.eq.s32.totalorder %s23, 2
    %p158 = por %p156, %p157
    %p159 = scmp.ne.s32.totalorder %s150, %s151
    %p160 = scmp.eq.s32.totalorder %s23, 0
    %p161 = por %p159, %p160
    %p162 = scmp.ne.s32.totalorder %s150, %s151
    %p163 = scmp.eq.s32.totalorder %s24, 2
    %p164 = por %p162, %p163
    %p166 = scmp.ne.s32.totalorder %s151, %s165
    %p167 = scmp.eq.s32.totalorder %s24, 0
    %p168 = por %p166, %p167
    %s170 = sadd.s32 %s169, 1
    %p173 = scmp.eq.s32.totalorder %s18, 2
    %p174 = scmp.ne.s32.totalorder %s169, %s171
    %p175 = scmp.eq.s32.totalorder %s18, 0
    %p176 = por %p174, %p175
    %p177 = scmp.ne.s32.totalorder %s169, %s171
    %p178 = scmp.eq.s32.totalorder %s23, 2
    %p179 = por %p177, %p178
    %p180 = scmp.ne.s32.totalorder %s171, %s172
    %p181 = scmp.eq.s32.totalorder %s23, 0
    %p182 = por %p180, %p181
    %p183 = scmp.ne.s32.totalorder %s171, %s172
    %p184 = scmp.eq.s32.totalorder %s24, 2
    %p185 = por %p183, %p184
    %p187 = scmp.ne.s32.totalorder %s172, %s186
    %p188 = scmp.eq.s32.totalorder %s24, 0
    %p189 = por %p187, %p188
    %s191 = sadd.s32 %s190, 1
    %p194 = scmp.eq.s32.totalorder %s18, 2
    %p195 = scmp.ne.s32.totalorder %s190, %s192
    %p196 = scmp.eq.s32.totalorder %s18, 0
    %p197 = por %p195, %p196
    %p198 = scmp.ne.s32.totalorder %s190, %s192
    %p199 = scmp.eq.s32.totalorder %s23, 2
    %p200 = por %p198, %p199
    %p201 = scmp.ne.s32.totalorder %s192, %s193
    %p202 = scmp.eq.s32.totalorder %s23, 0
    %p203 = por %p201, %p202
    %p204 = scmp.ne.s32.totalorder %s192, %s193
    %p205 = scmp.eq.s32.totalorder %s24, 2
    %p206 = por %p204, %p205
    %p208 = scmp.ne.s32.totalorder %s193, %s207
    %p209 = scmp.eq.s32.totalorder %s24, 0
    %p210 = por %p208, %p209
    %s212 = sadd.s32 %s211, 1
    %p215 = scmp.eq.s32.totalorder %s18, 2
    %p216 = scmp.ne.s32.totalorder %s211, %s213
    %p217 = scmp.eq.s32.totalorder %s18, 0
    %p218 = por %p216, %p217
    %p219 = scmp.ne.s32.totalorder %s211, %s213
    %p220 = scmp.eq.s32.totalorder %s23, 2
    %p221 = por %p219, %p220
    %p222 = scmp.ne.s32.totalorder %s213, %s214
    %p223 = scmp.eq.s32.totalorder %s23, 0
    %p224 = por %p222, %p223
    %p225 = scmp.ne.s32.totalorder %s213, %s214
    %p226 = scmp.eq.s32.totalorder %s24, 2
    %p227 = por %p225, %p226
    %p229 = scmp.ne.s32.totalorder %s214, %s228
    %p230 = scmp.eq.s32.totalorder %s24, 0
    %p231 = por %p229, %p230
    %s233 = sadd.s32 %s232, 1
    %p236 = scmp.eq.s32.totalorder %s18, 2
    %p237 = scmp.ne.s32.totalorder %s232, %s234
    %p238 = scmp.eq.s32.totalorder %s18, 0
    %p239 = por %p237, %p238
    %p240 = scmp.ne.s32.totalorder %s232, %s234
    %p241 = scmp.eq.s32.totalorder %s23, 2
    %p242 = por %p240, %p241
    %p243 = scmp.ne.s32.totalorder %s234, %s235
    %p244 = scmp.eq.s32.totalorder %s23, 0
    %p245 = por %p243, %p244
    %p246 = scmp.ne.s32.totalorder %s234, %s235
    %p247 = scmp.eq.s32.totalorder %s24, 2
    %p248 = por %p246, %p247
    %p250 = scmp.ne.s32.totalorder %s235, %s249
    %p251 = scmp.eq.s32.totalorder %s24, 0
    %p252 = por %p250, %p251
    %s254 = sadd.s32 %s253, 1
    %p257 = scmp.eq.s32.totalorder %s18, 2
    %p258 = scmp.ne.s32.totalorder %s253, %s255
    %p259 = scmp.eq.s32.totalorder %s18, 0
    %p260 = por %p258, %p259
    %p261 = scmp.ne.s32.totalorder %s253, %s255
    %p262 = scmp.eq.s32.totalorder %s23, 2
    %p263 = por %p261, %p262
    %p264 = scmp.ne.s32.totalorder %s255, %s256
    %p265 = scmp.eq.s32.totalorder %s23, 0
    %p266 = por %p264, %p265
    %p267 = scmp.ne.s32.totalorder %s255, %s256
    %p268 = scmp.eq.s32.totalorder %s24, 2
    %p269 = por %p267, %p268
    %p271 = scmp.ne.s32.totalorder %s256, %s270
    %p272 = scmp.eq.s32.totalorder %s24, 0
    %p273 = por %p271, %p272
    %s275 = sadd.s32 %s274, 1
    %p278 = scmp.eq.s32.totalorder %s18, 2
    %p279 = scmp.ne.s32.totalorder %s274, %s276
    %p280 = scmp.eq.s32.totalorder %s18, 0
    %p281 = por %p279, %p280
    %p282 = scmp.ne.s32.totalorder %s274, %s276
    %p283 = scmp.eq.s32.totalorder %s23, 2
    %p284 = por %p282, %p283
    %p285 = scmp.ne.s32.totalorder %s276, %s277
    %p286 = scmp.eq.s32.totalorder %s23, 0
    %p287 = por %p285, %p286
    %p288 = scmp.ne.s32.totalorder %s276, %s277
    %p289 = scmp.eq.s32.totalorder %s24, 2
    %p290 = por %p288, %p289
    %p292 = scmp.ne.s32.totalorder %s277, %s291
    %p293 = scmp.eq.s32.totalorder %s24, 0
    %p294 = por %p292, %p293
    %s295 = ssub.s32 %s26, %s33
    %p296 = scmp.eq.s32.totalorder %s295, 0
    %s298 = sadd.s32 %s297, 1
    %s299 = scalar_select %p296, %s297, %s298
    %p302 = pneg %p296
    %p303 = scmp.eq.s32.totalorder %s18, 2
    %p304 = por %p302, %p303
    %p305 = scmp.ne.s32.totalorder %s297, %s300
    %p306 = scmp.eq.s32.totalorder %s18, 0
    %p307 = por %p305, %p306
    %p308 = scmp.ne.s32.totalorder %s297, %s300
    %p309 = scmp.eq.s32.totalorder %s23, 2
    %p310 = por %p308, %p309
    %p311 = scmp.ne.s32.totalorder %s300, %s301
    %p312 = scmp.eq.s32.totalorder %s23, 0
    %p313 = por %p311, %p312
    %p314 = scmp.ne.s32.totalorder %s300, %s301
    %p315 = scmp.eq.s32.totalorder %s24, 2
    %p316 = por %p314, %p315
    %p318 = scmp.ne.s32.totalorder %s301, %s317
    %p319 = scmp.eq.s32.totalorder %s24, 0
    %p320 = por %p318, %p319
    %p321 = scmp.le.s32.totalorder 1, %s18
    %p322 = scmp.lt.s32.totalorder %s18, 4
    %p323 = pnand %p321, %p322
    %p324 = pneg %p323
    // Predicated region
    $region9: #{gnn_forward.1} parent=5 // pred_check
      _
    $region10: #{gnn_forward.1} parent=5 // pred_check_branch
      %326 = sbr.rel (%p323) target = $region12
    $region11: #{gnn_forward.1} parent=5 // pred_region
      %s327 = ssub.s32 %s18, 1
      // Predicated region
      $region13: #{gnn_forward.1} parent=11 // pred_check
        %p328 = pneg %p56
      $region14: #{gnn_forward.1} parent=11 // pred_check_branch
        %330 = sbr.rel (%p328) target = $region16
      $region15: #{gnn_forward.1} parent=11 // pred_region
        %s331 = smul.u32 2, %s28
        %p332 = scmp.lt.s32.totalorder %s331, 1
        %s333 = scalar_select %p332, %s331, 1
        %s334 = smul.addr %s333, 4
        %s335 = scalar_lea.vmem %s0, %s334
        %s336 = smul.u32 2, %s28
      $region16: #{gnn_forward.1} parent=11 // pred_fallthru
        _
      // Predicated region
      $region17: #{gnn_forward.1} parent=11 // pred_check
        %p337 = pneg %p77
      $region18: #{gnn_forward.1} parent=11 // pred_check_branch
        %339 = sbr.rel (%p337) target = $region20
      $region19: #{gnn_forward.1} parent=11 // pred_region
        _
      $region20: #{gnn_forward.1} parent=11 // pred_fallthru
        _
      // Predicated region
      $region21: #{gnn_forward.1} parent=11 // pred_check
        %p340 = pneg %p98
      $region22: #{gnn_forward.1} parent=11 // pred_check_branch
        %342 = sbr.rel (%p340) target = $region24
      $region23: #{gnn_forward.1} parent=11 // pred_region
        _
      $region24: #{gnn_forward.1} parent=11 // pred_fallthru
        _
      // Predicated region
      $region25: #{gnn_forward.1} parent=11 // pred_check
        %p343 = pneg %p119
      $region26: #{gnn_forward.1} parent=11 // pred_check_branch
        %345 = sbr.rel (%p343) target = $region28
      $region27: #{gnn_forward.1} parent=11 // pred_region
        _
      $region28: #{gnn_forward.1} parent=11 // pred_fallthru
        _
      // Predicated region
      $region29: #{gnn_forward.1} parent=11 // pred_check
        %p346 = pneg %p140
      $region30: #{gnn_forward.1} parent=11 // pred_check_branch
        %348 = sbr.rel (%p346) target = $region32
      $region31: #{gnn_forward.1} parent=11 // pred_region
        _
      $region32: #{gnn_forward.1} parent=11 // pred_fallthru
        _
      // Predicated region
      $region33: #{gnn_forward.1} parent=11 // pred_check
        %p349 = pneg %p161
      $region34: #{gnn_forward.1} parent=11 // pred_check_branch
        %351 = sbr.rel (%p349) target = $region36
      $region35: #{gnn_forward.1} parent=11 // pred_region
        _
      $region36: #{gnn_forward.1} parent=11 // pred_fallthru
        _
      // Predicated region
      $region37: #{gnn_forward.1} parent=11 // pred_check
        %p352 = pneg %p182
      $region38: #{gnn_forward.1} parent=11 // pred_check_branch
        %354 = sbr.rel (%p352) target = $region40
      $region39: #{gnn_forward.1} parent=11 // pred_region
        _
      $region40: #{gnn_forward.1} parent=11 // pred_fallthru
        _
      // Predicated region
      $region41: #{gnn_forward.1} parent=11 // pred_check
        %p355 = pneg %p203
      $region42: #{gnn_forward.1} parent=11 // pred_check_branch
        %357 = sbr.rel (%p355) target = $region44
      $region43: #{gnn_forward.1} parent=11 // pred_region
        _
      $region44: #{gnn_forward.1} parent=11 // pred_fallthru
        _
      // Predicated region
      $region45: #{gnn_forward.1} parent=11 // pred_check
        %p358 = pneg %p224
      $region46: #{gnn_forward.1} parent=11 // pred_check_branch
        %360 = sbr.rel (%p358) target = $region48
      $region47: #{gnn_forward.1} parent=11 // pred_region
        _
      $region48: #{gnn_forward.1} parent=11 // pred_fallthru
        _
      // Predicated region
      $region49: #{gnn_forward.1} parent=11 // pred_check
        %p361 = pneg %p245
      $region50: #{gnn_forward.1} parent=11 // pred_check_branch
        %363 = sbr.rel (%p361) target = $region52
      $region51: #{gnn_forward.1} parent=11 // pred_region
        _
      $region52: #{gnn_forward.1} parent=11 // pred_fallthru
        _
      // Predicated region
      $region53: #{gnn_forward.1} parent=11 // pred_check
        %p364 = pneg %p266
      $region54: #{gnn_forward.1} parent=11 // pred_check_branch
        %366 = sbr.rel (%p364) target = $region56
      $region55: #{gnn_forward.1} parent=11 // pred_region
        _
      $region56: #{gnn_forward.1} parent=11 // pred_fallthru
        _
      // Predicated region
      $region57: #{gnn_forward.1} parent=11 // pred_check
        %p367 = pneg %p287
      $region58: #{gnn_forward.1} parent=11 // pred_check_branch
        %369 = sbr.rel (%p367) target = $region60
      $region59: #{gnn_forward.1} parent=11 // pred_region
        _
      $region60: #{gnn_forward.1} parent=11 // pred_fallthru
        _
    $region12: #{gnn_forward.1} parent=5 // pred_fallthru
      _
    %p370 = scmp.lt.s32.totalorder %s18, 3
    // Predicated region
    $region61: #{gnn_forward.1} parent=5 // pred_check
      %p371 = pneg %p370
    $region62: #{gnn_forward.1} parent=5 // pred_check_branch
      %373 = sbr.rel (%p371) target = $region64
    $region63: #{gnn_forward.1} parent=5 // pred_region
      _
    $region64: #{gnn_forward.1} parent=5 // pred_fallthru
      _
    %p374 = scmp.le.s32.totalorder 1, %s18
    %p375 = scmp.lt.s32.totalorder %s18, 4
    %p376 = pnand %p374, %p375
    %p377 = pneg %p376
    // Predicated region
    $region65: #{gnn_forward.1} parent=5 // pred_check
      _
    $region66: #{gnn_forward.1} parent=5 // pred_check_branch
      %379 = sbr.rel (%p376) target = $region68
    $region67: #{gnn_forward.1} parent=5 // pred_region
      %s380 = ssub.s32 %s18, 1
      %s381 = smul.u32 2, %s28
      %p382 = scmp.lt.s32.totalorder %s381, 1
      %s383 = scalar_select %p382, %s381, 1
      %s384 = smul.addr %s383, 4
      %s385 = scalar_lea.vmem %s0, %s384
      %p386 = pneg %p56
      %p387 = pneg %p53
      %p388 = pneg %p77
      %p389 = pneg %p74
      %p390 = pneg %p98
      %p391 = pneg %p95
      %p392 = pneg %p119
      %p393 = pneg %p116
      %p394 = pneg %p140
      %p395 = pneg %p137
      %p396 = pneg %p161
      %p397 = pneg %p158
      %p398 = pneg %p182
      %p399 = pneg %p179
      %p400 = pneg %p203
      %p401 = pneg %p200
      %p402 = pneg %p224
      %p403 = pneg %p221
      %p404 = pneg %p245
      %p405 = pneg %p242
      %p406 = pneg %p266
      %p407 = pneg %p263
      %p408 = pneg %p287
      %p409 = pneg %p284
      %p410 = pneg %p313
      %p411 = pneg %p310
      %s412 = smul.u32 2, %s28
      %p413 = scmp.lt.s32.totalorder %s412, 1
      %s414 = scalar_select %p413, %s412, 1
      %s415 = smul.addr %s414, 8
      %s416 = scalar_lea.vmem %s12, %s415
      %s417 = smul.u32 2, %s28
      %p418 = scmp.lt.s32.totalorder %s417, 1
      %s419 = scalar_select %p418, %s417, 1
      %s420 = smul.addr %s419, 4
      %s421 = scalar_lea.vmem %s0, %s420
      %s422 = smul.u32 2, %s28
      %s423 = smul.u32 2, %s28
      %p424 = scmp.lt.s32.totalorder %s423, 1
      %s425 = scalar_select %p424, %s423, 1
      %s426 = smul.addr %s425, 8
      %s427 = scalar_lea.vmem %s12, %s426
      %s428 = smul.u32 2, %s28
      %s430 = smul.u32 %s28, 16
      %v431 = vld [vmem:[%s421] sm:$0xf]
      %v432 = vld [vmem:[%s421 + $0x4] sm:$0xf]
      %p433 = scmp.eq.s32.totalorder %s27, 0
      // Predicated region
      $region69: #{gnn_forward.1} parent=67 // pred_check
        %p434 = pneg %p433
      $region70: #{gnn_forward.1} parent=67 // pred_check_branch
        %436 = sbr.rel (%p434) target = $region72
      $region71: #{gnn_forward.1} parent=67 // pred_region
        %v437 = vld [vmem:[%s1] sm:$0xf]
        %v438 = vld [vmem:[%s1 + $0x4] sm:$0xf]
        %v441 = vunpack.c.l.b16 %v431
        %v442 = vunpack.c.l.b16 %v432
        %v443 = vpack.c.b16 %v442, %v441
        %v446 = vunpack.c.l.b16 %v437
        %v447 = vunpack.c.l.b16 %v438
        %v448 = vpack.c.b16 %v447, %v446
        %vm450 = vcmask 130048
        %v452 = vsel %vm450, %v443, 0
        %454 = vmatprep.subr.bf16.mxu0 0
        %455 = vmatpush1.bf16.msra.mxu0 0
        %456 = vmatprep.subr.bf16.mxu0 0
        %457 = vmatpush1.bf16.msra.mxu0 0
        %458 = vmatprep.subr.bf16.mxu0 0
        %459 = vmatpush1.bf16.msra.mxu0 0
        %460 = vmatprep.subr.bf16.mxu0 0
        %461 = vmatpush1.bf16.msra.mxu0 0
        %462 = vmatprep.subr.bf16.mxu0 0
        %463 = vmatpush1.bf16.msra.mxu0 0
        %464 = vmatprep.subr.bf16.mxu0 0
        %465 = vmatpush1.bf16.msra.mxu0 0
        %466 = vmatprep.subr.bf16.mxu0 0
        %467 = vmatpush1.bf16.msra.mxu0 0
        %468 = vmatprep.subr.bf16.mxu0 0
        %469 = vmatpush1.bf16.msra.mxu0 %v448
        %470 = vmatprep.subr.bf16.mxu0 0
        %471 = vmatpush2.bf16.msra.mxu0 0
        %472 = vmatprep.subr.bf16.mxu0 0
        %473 = vmatpush2.bf16.msra.mxu0 0
        %474 = vmatprep.subr.bf16.mxu0 0
        %475 = vmatpush2.bf16.msra.mxu0 0
        %476 = vmatprep.subr.bf16.mxu0 0
        %477 = vmatpush2.bf16.msra.mxu0 0
        %478 = vmatprep.subr.bf16.mxu0 0
        %479 = vmatpush2.bf16.msra.mxu0 0
        %480 = vmatprep.subr.bf16.mxu0 0
        %481 = vmatpush2.bf16.msra.mxu0 0
        %482 = vmatprep.subr.bf16.mxu0 0
        %483 = vmatpush2.bf16.msra.mxu0 0
        %484 = vmatprep.subr.bf16.mxu0 0
        %485 = vmatpush2.bf16.msra.mxu0 0
        %486 = vmatprep.mubr.bf16.mxu0 0
        %487 = vmatmul.mubr.bf16.gmra.mxu0 %v452
        %v488 = vpop.f32.mrf.mxu0
        %v489 = vadd.f32 0.0, %v488
        %v490 = vpop.f32.mrf.mxu0
        %v491 = vpop.f32.mrf.mxu0
        %v492 = vadd.f32 0.0, %v491
        %v493 = vpop.f32.mrf.mxu0
        %494 = vdwg.mxu0
        %v495 = vpack.c.bf16 %v492, %v489
        %v496 = vld [vmem:[%s2] sm:$0xf]
        %v497 = vld [vmem:[%s2 + $0x4] sm:$0xf]
        %v498 = vld [vmem:[%s2 + $0x8] sm:$0xf]
        %v499 = vld [vmem:[%s2 + $0xc] sm:$0xf]
        %v500 = vld [vmem:[%s2 + $0x10] sm:$0xf]
        %v501 = vld [vmem:[%s2 + $0x14] sm:$0x3]
        %v502 = vld [vmem:[%s3] sm:$0x1]
        %v504 = vlaneseq
        %v505 = vshrl.u32 %v504, 7
        %v506 = vsub.s32 0, %v505
        %v507 = vrot.slane %v502, %v506
        %v515 = vunpack.c.l.b16 %v496
        %v516 = vunpack.c.l.b16 %v497
        %v517 = vunpack.c.l.b16 %v498
        %v518 = vunpack.c.l.b16 %v499
        %v519 = vunpack.c.l.b16 %v500
        %v520 = vunpack.c.l.b16 %v501
        %v521 = vpack.c.b16 %v516, %v515
        %v522 = vpack.c.b16 %v518, %v517
        %v523 = vpack.c.b16 %v520, %v519
        %vm526 = vcmask 359424
        %v528 = vsel %vm526, %v495, 0
        %vm530 = vcmask 1045504
        %v532 = vsel %vm530, %v523, 0
        %534 = vmatprep.subr.bf16.mxu0 0
        %535 = vmatpush1.bf16.msra.mxu0 0
        %536 = vmatprep.subr.bf16.mxu0 0
        %537 = vmatpush1.bf16.msra.mxu0 0
        %538 = vmatprep.subr.bf16.mxu0 0
        %539 = vmatpush1.bf16.msra.mxu0 0
        %540 = vmatprep.subr.bf16.mxu0 0
        %541 = vmatpush1.bf16.msra.mxu0 0
        %542 = vmatprep.subr.bf16.mxu0 0
        %543 = vmatpush1.bf16.msra.mxu0 0
        %544 = vmatprep.subr.bf16.mxu0 0
        %545 = vmatpush1.bf16.msra.mxu0 %v532
        %546 = vmatprep.subr.bf16.mxu0 0
        %547 = vmatpush1.bf16.msra.mxu0 %v522
        %548 = vmatprep.subr.bf16.mxu0 0
        %549 = vmatpush1.bf16.msra.mxu0 %v521
        %550 = vmatprep.subr.bf16.mxu0 0
        %551 = vmatpush2.bf16.msra.mxu0 0
        %552 = vmatprep.subr.bf16.mxu0 0
        %553 = vmatpush2.bf16.msra.mxu0 0
        %554 = vmatprep.subr.bf16.mxu0 0
        %555 = vmatpush2.bf16.msra.mxu0 0
        %556 = vmatprep.subr.bf16.mxu0 0
        %557 = vmatpush2.bf16.msra.mxu0 0
        %558 = vmatprep.subr.bf16.mxu0 0
        %559 = vmatpush2.bf16.msra.mxu0 0
        %560 = vmatprep.subr.bf16.mxu0 0
        %561 = vmatpush2.bf16.msra.mxu0 0
        %562 = vmatprep.subr.bf16.mxu0 0
        %563 = vmatpush2.bf16.msra.mxu0 0
        %564 = vmatprep.subr.bf16.mxu0 0
        %565 = vmatpush2.bf16.msra.mxu0 0
        %566 = vmatprep.mubr.bf16.mxu0 0
        %567 = vmatmul.mubr.bf16.gmra.mxu0 %v528
        %v568 = vpop.f32.mrf.mxu0
        %v569 = vadd.f32 %v507, %v568
        %v570 = vpop.f32.mrf.mxu0
        %v571 = vpop.f32.mrf.mxu0
        %v572 = vadd.f32 %v507, %v571
        %v573 = vpop.f32.mrf.mxu0
        %574 = vdwg.mxu0
        %v575 = vmax.f32 %v569, 0.0
        %v576 = vmax.f32 %v572, 0.0
        %v577 = vpack.c.bf16 %v576, %v575
        %v578 = vld [vmem:[%s4] sm:$0xf]
        %v579 = vld [vmem:[%s4 + $0x4] sm:$0xf]
        %v580 = vld [vmem:[%s4 + $0x8] sm:$0xf]
        %v581 = vld [vmem:[%s4 + $0xc] sm:$0xf]
        %v582 = vld [vmem:[%s4 + $0x10] sm:$0xf]
        %v583 = vld [vmem:[%s4 + $0x14] sm:$0xf]
        %v584 = vld [vmem:[%s4 + $0x18] sm:$0xf]
        %v585 = vld [vmem:[%s4 + $0x1c] sm:$0xf]
        %v586 = vld [vmem:[%s4 + $0x20] sm:$0xf]
        %v587 = vld [vmem:[%s4 + $0x24] sm:$0xf]
        %v588 = vld [vmem:[%s4 + $0x28] sm:$0xf]
        %v589 = vld [vmem:[%s4 + $0x2c] sm:$0xf]
        %v590 = vld [vmem:[%s4 + $0x30] sm:$0xf]
        %v591 = vld [vmem:[%s4 + $0x34] sm:$0xf]
        %v592 = vld [vmem:[%s4 + $0x38] sm:$0xf]
        %v593 = vld [vmem:[%s4 + $0x3c] sm:$0xf]
        %v610 = vunpack.c.l.b16 %v578
        %v611 = vunpack.c.l.b16 %v579
        %v612 = vunpack.c.l.b16 %v580
        %v613 = vunpack.c.l.b16 %v581
        %v614 = vunpack.c.l.b16 %v582
        %v615 = vunpack.c.l.b16 %v583
        %v616 = vunpack.c.l.b16 %v584
        %v617 = vunpack.c.l.b16 %v585
        %v618 = vunpack.c.l.b16 %v586
        %v619 = vunpack.c.l.b16 %v587
        %v620 = vunpack.c.l.b16 %v588
        %v621 = vunpack.c.l.b16 %v589
        %v622 = vunpack.c.l.b16 %v590
        %v623 = vunpack.c.l.b16 %v591
        %v624 = vunpack.c.l.b16 %v592
        %v625 = vunpack.c.l.b16 %v593
        %v626 = vpack.c.b16 %v611, %v610
        %v627 = vpack.c.b16 %v613, %v612
        %v628 = vpack.c.b16 %v615, %v614
        %v629 = vpack.c.b16 %v617, %v616
        %v630 = vpack.c.b16 %v619, %v618
        %v631 = vpack.c.b16 %v621, %v620
        %v632 = vpack.c.b16 %v623, %v622
        %v633 = vpack.c.b16 %v625, %v624
        %642 = vmatprep.subr.bf16.mxu0 0
        %643 = vmatpush1.bf16.msra.mxu0 %v633
        %644 = vmatprep.subr.bf16.mxu0 0
        %645 = vmatpush1.bf16.msra.mxu0 %v632
        %646 = vmatprep.subr.bf16.mxu0 0
        %647 = vmatpush1.bf16.msra.mxu0 %v631
        %648 = vmatprep.subr.bf16.mxu0 0
        %649 = vmatpush1.bf16.msra.mxu0 %v630
        %650 = vmatprep.subr.bf16.mxu0 0
        %651 = vmatpush1.bf16.msra.mxu0 %v629
        %652 = vmatprep.subr.bf16.mxu0 0
        %653 = vmatpush1.bf16.msra.mxu0 %v628
        %654 = vmatprep.subr.bf16.mxu0 0
        %655 = vmatpush1.bf16.msra.mxu0 %v627
        %656 = vmatprep.subr.bf16.mxu0 0
        %657 = vmatpush1.bf16.msra.mxu0 %v626
        %658 = vmatprep.subr.bf16.mxu0 0
        %659 = vmatpush2.bf16.msra.mxu0 0
        %660 = vmatprep.subr.bf16.mxu0 0
        %661 = vmatpush2.bf16.msra.mxu0 0
        %662 = vmatprep.subr.bf16.mxu0 0
        %663 = vmatpush2.bf16.msra.mxu0 0
        %664 = vmatprep.subr.bf16.mxu0 0
        %665 = vmatpush2.bf16.msra.mxu0 0
        %666 = vmatprep.subr.bf16.mxu0 0
        %667 = vmatpush2.bf16.msra.mxu0 0
        %668 = vmatprep.subr.bf16.mxu0 0
        %669 = vmatpush2.bf16.msra.mxu0 0
        %670 = vmatprep.subr.bf16.mxu0 0
        %671 = vmatpush2.bf16.msra.mxu0 0
        %672 = vmatprep.subr.bf16.mxu0 0
        %673 = vmatpush2.bf16.msra.mxu0 0
        %674 = vmatprep.mubr.bf16.mxu0 0
        %675 = vmatmul.mubr.bf16.gmra.mxu0 %v577
        %v676 = vpop.f32.mrf.mxu0
        %v677 = vadd.f32 0.0, %v676
        %v678 = vpop.f32.mrf.mxu0
        %v679 = vpop.f32.mrf.mxu0
        %v680 = vadd.f32 0.0, %v679
        %v681 = vpop.f32.mrf.mxu0
        %682 = vdwg.mxu0
        %v683 = vpack.c.bf16 %v680, %v677
        %v685 = vunpack.c.l.b16 %v683
        %v686 = vunpack.c.h.b16 %v683
        %v687 = vpack.c.b16 %v685, %v685
        %v688 = vpack.c.b16 %v686, %v686
        %s691 = sshra.s32 %s430, 3
        %s692 = sand.u32 %s430, 7
        %s693 = smul.addr %s691, 4
        %s694 = scalar_lea.vmem [#allocation2], %s693
        %vm695 = vcmask 519168
        %696 = vst.msk [vmem:[%s694] sm:$0xf] %vm695, %v687
        %697 = vst.msk [vmem:[%s694 + $0x4] sm:$0xf] %vm695, %v688
      $region72: #{gnn_forward.1} parent=67 // pred_fallthru
        _
      %p698 = scmp.eq.s32.totalorder %s27, 1
      // Predicated region
      $region73: #{gnn_forward.1} parent=67 // pred_check
        %p699 = pneg %p698
      $region74: #{gnn_forward.1} parent=67 // pred_check_branch
        %701 = sbr.rel (%p699) target = $region76
      $region75: #{gnn_forward.1} parent=67 // pred_region
        %v702 = vld [vmem:[#allocation2] sm:$0xf]
        %v703 = vld [vmem:[#allocation2 + $0x4] sm:$0xf]
        %v704 = vld [vmem:[%s5] sm:$0x1]
        %v706 = vlaneseq
        %v707 = vshrl.u32 %v706, 7
        %v708 = vsub.s32 0, %v707
        %v709 = vrot.slane %v704, %v708
        %v713 = vunpack.c.l.b16 %v431
        %v714 = vunpack.c.l.b16 %v432
        %v715 = vpack.c.b16 %v714, %v713
        %v718 = vunpack.c.l.b16 %v702
        %v719 = vunpack.c.l.b16 %v703
        %v720 = vpack.c.b16 %v719, %v718
        %vm722 = vcmask 130048
        %v724 = vsel %vm722, %v715, 0
        %726 = vmatprep.subr.bf16.mxu0 0
        %727 = vmatpush1.bf16.msra.mxu0 0
        %728 = vmatprep.subr.bf16.mxu0 0
        %729 = vmatpush1.bf16.msra.mxu0 0
        %730 = vmatprep.subr.bf16.mxu0 0
        %731 = vmatpush1.bf16.msra.mxu0 0
        %732 = vmatprep.subr.bf16.mxu0 0
        %733 = vmatpush1.bf16.msra.mxu0 0
        %734 = vmatprep.subr.bf16.mxu0 0
        %735 = vmatpush1.bf16.msra.mxu0 0
        %736 = vmatprep.subr.bf16.mxu0 0
        %737 = vmatpush1.bf16.msra.mxu0 0
        %738 = vmatprep.subr.bf16.mxu0 0
        %739 = vmatpush1.bf16.msra.mxu0 0
        %740 = vmatprep.subr.bf16.mxu0 0
        %741 = vmatpush1.bf16.msra.mxu0 %v720
        %742 = vmatprep.subr.bf16.mxu0 0
        %743 = vmatpush2.bf16.msra.mxu0 0
        %744 = vmatprep.subr.bf16.mxu0 0
        %745 = vmatpush2.bf16.msra.mxu0 0
        %746 = vmatprep.subr.bf16.mxu0 0
        %747 = vmatpush2.bf16.msra.mxu0 0
        %748 = vmatprep.subr.bf16.mxu0 0
        %749 = vmatpush2.bf16.msra.mxu0 0
        %750 = vmatprep.subr.bf16.mxu0 0
        %751 = vmatpush2.bf16.msra.mxu0 0
        %752 = vmatprep.subr.bf16.mxu0 0
        %753 = vmatpush2.bf16.msra.mxu0 0
        %754 = vmatprep.subr.bf16.mxu0 0
        %755 = vmatpush2.bf16.msra.mxu0 0
        %756 = vmatprep.subr.bf16.mxu0 0
        %757 = vmatpush2.bf16.msra.mxu0 0
        %758 = vmatprep.mubr.bf16.mxu0 0
        %759 = vmatmul.mubr.bf16.gmra.mxu0 %v724
        %v760 = vpop.f32.mrf.mxu0
        %v761 = vadd.f32 %v709, %v760
        %v762 = vpop.f32.mrf.mxu0
        %v763 = vpop.f32.mrf.mxu0
        %v764 = vadd.f32 %v709, %v763
        %v765 = vpop.f32.mrf.mxu0
        %766 = vdwg.mxu0
        %v767 = vmax.f32 %v761, 0.0
        %v768 = vmax.f32 %v764, 0.0
        %v769 = vpack.c.bf16 %v768, %v767
        %v770 = vld [vmem:[%s6] sm:$0xf]
        %v771 = vld [vmem:[%s6 + $0x4] sm:$0xf]
        %v772 = vld [vmem:[%s6 + $0x8] sm:$0xf]
        %v773 = vld [vmem:[%s6 + $0xc] sm:$0xf]
        %v774 = vld [vmem:[%s6 + $0x10] sm:$0xf]
        %v775 = vld [vmem:[%s6 + $0x14] sm:$0xf]
        %v776 = vld [vmem:[%s6 + $0x18] sm:$0xf]
        %v777 = vld [vmem:[%s6 + $0x1c] sm:$0xf]
        %v786 = vunpack.c.l.b16 %v770
        %v787 = vunpack.c.l.b16 %v771
        %v788 = vunpack.c.l.b16 %v772
        %v789 = vunpack.c.l.b16 %v773
        %v790 = vunpack.c.l.b16 %v774
        %v791 = vunpack.c.l.b16 %v775
        %v792 = vunpack.c.l.b16 %v776
        %v793 = vunpack.c.l.b16 %v777
        %v794 = vpack.c.b16 %v787, %v786
        %v795 = vpack.c.b16 %v789, %v788
        %v796 = vpack.c.b16 %v791, %v790
        %v797 = vpack.c.b16 %v793, %v792
        %vm802 = vcmask 523264
        %v804 = vsel %vm802, %v769, 0
        %806 = vmatprep.subr.bf16.mxu0 0
        %807 = vmatpush1.bf16.msra.mxu0 0
        %808 = vmatprep.subr.bf16.mxu0 0
        %809 = vmatpush1.bf16.msra.mxu0 0
        %810 = vmatprep.subr.bf16.mxu0 0
        %811 = vmatpush1.bf16.msra.mxu0 0
        %812 = vmatprep.subr.bf16.mxu0 0
        %813 = vmatpush1.bf16.msra.mxu0 0
        %814 = vmatprep.subr.bf16.mxu0 0
        %815 = vmatpush1.bf16.msra.mxu0 %v797
        %816 = vmatprep.subr.bf16.mxu0 0
        %817 = vmatpush1.bf16.msra.mxu0 %v796
        %818 = vmatprep.subr.bf16.mxu0 0
        %819 = vmatpush1.bf16.msra.mxu0 %v795
        %820 = vmatprep.subr.bf16.mxu0 0
        %821 = vmatpush1.bf16.msra.mxu0 %v794
        %822 = vmatprep.subr.bf16.mxu0 0
        %823 = vmatpush2.bf16.msra.mxu0 0
        %824 = vmatprep.subr.bf16.mxu0 0
        %825 = vmatpush2.bf16.msra.mxu0 0
        %826 = vmatprep.subr.bf16.mxu0 0
        %827 = vmatpush2.bf16.msra.mxu0 0
        %828 = vmatprep.subr.bf16.mxu0 0
        %829 = vmatpush2.bf16.msra.mxu0 0
        %830 = vmatprep.subr.bf16.mxu0 0
        %831 = vmatpush2.bf16.msra.mxu0 0
        %832 = vmatprep.subr.bf16.mxu0 0
        %833 = vmatpush2.bf16.msra.mxu0 0
        %834 = vmatprep.subr.bf16.mxu0 0
        %835 = vmatpush2.bf16.msra.mxu0 0
        %836 = vmatprep.subr.bf16.mxu0 0
        %837 = vmatpush2.bf16.msra.mxu0 0
        %838 = vmatprep.mubr.bf16.mxu0 0
        %839 = vmatmul.mubr.bf16.gmra.mxu0 %v804
        %v840 = vpop.f32.mrf.mxu0
        %v841 = vadd.f32 0.0, %v840
        %v842 = vpop.f32.mrf.mxu0
        %v843 = vpop.f32.mrf.mxu0
        %v844 = vadd.f32 0.0, %v843
        %v845 = vpop.f32.mrf.mxu0
        %846 = vdwg.mxu0
        %v847 = vpack.c.bf16 %v844, %v841
        %v849 = vunpack.c.l.b16 %v847
        %v850 = vunpack.c.h.b16 %v847
        %v851 = vpack.c.b16 %v849, %v849
        %v852 = vpack.c.b16 %v850, %v850
        %s855 = sshra.s32 %s430, 3
        %s856 = sand.u32 %s430, 7
        %s857 = smul.addr %s855, 4
        %s858 = scalar_lea.vmem [#allocation3], %s857
        %vm859 = vcmask 257024
        %860 = vst.msk [vmem:[%s858] sm:$0xf] %vm859, %v851
        %861 = vst.msk [vmem:[%s858 + $0x4] sm:$0xf] %vm859, %v852
      $region76: #{gnn_forward.1} parent=67 // pred_fallthru
        _
      %p862 = scmp.eq.s32.totalorder %s27, 2
      // Predicated region
      $region77: #{gnn_forward.1} parent=67 // pred_check
        %p863 = pneg %p862
      $region78: #{gnn_forward.1} parent=67 // pred_check_branch
        %865 = sbr.rel (%p863) target = $region80
      $region79: #{gnn_forward.1} parent=67 // pred_region
        %v866 = vld [vmem:[#allocation3] sm:$0xf]
        %v867 = vld [vmem:[#allocation3 + $0x4] sm:$0xf]
        %v868 = vld [vmem:[%s7] sm:$0x1]
        %v870 = vlaneseq
        %v871 = vshrl.u32 %v870, 7
        %v872 = vsub.s32 0, %v871
        %v873 = vrot.slane %v868, %v872
        %v877 = vunpack.c.l.b16 %v431
        %v878 = vunpack.c.l.b16 %v432
        %v879 = vpack.c.b16 %v878, %v877
        %v882 = vunpack.c.l.b16 %v866
        %v883 = vunpack.c.l.b16 %v867
        %v884 = vpack.c.b16 %v883, %v882
        %vm886 = vcmask 130048
        %v888 = vsel %vm886, %v879, 0
        %890 = vmatprep.subr.bf16.mxu0 0
        %891 = vmatpush1.bf16.msra.mxu0 0
        %892 = vmatprep.subr.bf16.mxu0 0
        %893 = vmatpush1.bf16.msra.mxu0 0
        %894 = vmatprep.subr.bf16.mxu0 0
        %895 = vmatpush1.bf16.msra.mxu0 0
        %896 = vmatprep.subr.bf16.mxu0 0
        %897 = vmatpush1.bf16.msra.mxu0 0
        %898 = vmatprep.subr.bf16.mxu0 0
        %899 = vmatpush1.bf16.msra.mxu0 0
        %900 = vmatprep.subr.bf16.mxu0 0
        %901 = vmatpush1.bf16.msra.mxu0 0
        %902 = vmatprep.subr.bf16.mxu0 0
        %903 = vmatpush1.bf16.msra.mxu0 0
        %904 = vmatprep.subr.bf16.mxu0 0
        %905 = vmatpush1.bf16.msra.mxu0 %v884
        %906 = vmatprep.subr.bf16.mxu0 0
        %907 = vmatpush2.bf16.msra.mxu0 0
        %908 = vmatprep.subr.bf16.mxu0 0
        %909 = vmatpush2.bf16.msra.mxu0 0
        %910 = vmatprep.subr.bf16.mxu0 0
        %911 = vmatpush2.bf16.msra.mxu0 0
        %912 = vmatprep.subr.bf16.mxu0 0
        %913 = vmatpush2.bf16.msra.mxu0 0
        %914 = vmatprep.subr.bf16.mxu0 0
        %915 = vmatpush2.bf16.msra.mxu0 0
        %916 = vmatprep.subr.bf16.mxu0 0
        %917 = vmatpush2.bf16.msra.mxu0 0
        %918 = vmatprep.subr.bf16.mxu0 0
        %919 = vmatpush2.bf16.msra.mxu0 0
        %920 = vmatprep.subr.bf16.mxu0 0
        %921 = vmatpush2.bf16.msra.mxu0 0
        %922 = vmatprep.mubr.bf16.mxu0 0
        %923 = vmatmul.mubr.bf16.gmra.mxu0 %v888
        %v924 = vpop.f32.mrf.mxu0
        %v925 = vadd.f32 %v873, %v924
        %v926 = vpop.f32.mrf.mxu0
        %v927 = vpop.f32.mrf.mxu0
        %v928 = vadd.f32 %v873, %v927
        %v929 = vpop.f32.mrf.mxu0
        %930 = vdwg.mxu0
        %v931 = vmax.f32 %v925, 0.0
        %v932 = vmax.f32 %v928, 0.0
        %v933 = vpack.c.bf16 %v932, %v931
        %v934 = vld [vmem:[%s8] sm:$0xf]
        %v935 = vld [vmem:[%s8 + $0x4] sm:$0xf]
        %v936 = vld [vmem:[%s8 + $0x8] sm:$0xf]
        %v937 = vld [vmem:[%s8 + $0xc] sm:$0xf]
        %v938 = vld [vmem:[%s9] sm:$0x1]
        %v940 = vlaneseq
        %v941 = vshrl.u32 %v940, 7
        %v942 = vsub.s32 0, %v941
        %v943 = vrot.slane %v938, %v942
        %v949 = vunpack.c.l.b16 %v934
        %v950 = vunpack.c.l.b16 %v935
        %v951 = vunpack.c.l.b16 %v936
        %v952 = vunpack.c.l.b16 %v937
        %v953 = vpack.c.b16 %v950, %v949
        %v954 = vpack.c.b16 %v952, %v951
        %vm957 = vcmask 261120
        %v959 = vsel %vm957, %v933, 0
        %961 = vmatprep.subr.bf16.mxu0 0
        %962 = vmatpush1.bf16.msra.mxu0 0
        %963 = vmatprep.subr.bf16.mxu0 0
        %964 = vmatpush1.bf16.msra.mxu0 0
        %965 = vmatprep.subr.bf16.mxu0 0
        %966 = vmatpush1.bf16.msra.mxu0 0
        %967 = vmatprep.subr.bf16.mxu0 0
        %968 = vmatpush1.bf16.msra.mxu0 0
        %969 = vmatprep.subr.bf16.mxu0 0
        %970 = vmatpush1.bf16.msra.mxu0 0
        %971 = vmatprep.subr.bf16.mxu0 0
        %972 = vmatpush1.bf16.msra.mxu0 0
        %973 = vmatprep.subr.bf16.mxu0 0
        %974 = vmatpush1.bf16.msra.mxu0 %v954
        %975 = vmatprep.subr.bf16.mxu0 0
        %976 = vmatpush1.bf16.msra.mxu0 %v953
        %977 = vmatprep.subr.bf16.mxu0 0
        %978 = vmatpush2.bf16.msra.mxu0 0
        %979 = vmatprep.subr.bf16.mxu0 0
        %980 = vmatpush2.bf16.msra.mxu0 0
        %981 = vmatprep.subr.bf16.mxu0 0
        %982 = vmatpush2.bf16.msra.mxu0 0
        %983 = vmatprep.subr.bf16.mxu0 0
        %984 = vmatpush2.bf16.msra.mxu0 0
        %985 = vmatprep.subr.bf16.mxu0 0
        %986 = vmatpush2.bf16.msra.mxu0 0
        %987 = vmatprep.subr.bf16.mxu0 0
        %988 = vmatpush2.bf16.msra.mxu0 0
        %989 = vmatprep.subr.bf16.mxu0 0
        %990 = vmatpush2.bf16.msra.mxu0 0
        %991 = vmatprep.subr.bf16.mxu0 0
        %992 = vmatpush2.bf16.msra.mxu0 0
        %993 = vmatprep.mubr.bf16.mxu0 0
        %994 = vmatmul.mubr.bf16.gmra.mxu0 %v959
        %v995 = vpop.f32.mrf.mxu0
        %v996 = vadd.f32 %v943, %v995
        %v997 = vpop.f32.mrf.mxu0
        %v998 = vpop.f32.mrf.mxu0
        %v999 = vadd.f32 %v943, %v998
        %v1000 = vpop.f32.mrf.mxu0
        %1001 = vdwg.mxu0
        %v1002 = vmax.f32 %v996, 0.0
        %v1003 = vmax.f32 %v999, 0.0
        %v1004 = vpack.c.bf16 %v1003, %v1002
        %v1005 = vld [vmem:[%s10] sm:$0xf]
        %v1006 = vld [vmem:[%s10 + $0x4] sm:$0xf]
        %v1007 = vld [vmem:[%s11] sm:$0x1]
        %v1009 = vlaneseq
        %v1010 = vshrl.u32 %v1009, 7
        %v1011 = vsub.s32 0, %v1010
        %v1012 = vrot.slane %v1007, %v1011
        %v1016 = vunpack.c.l.b16 %v1005
        %v1017 = vunpack.c.l.b16 %v1006
        %v1018 = vpack.c.b16 %v1017, %v1016
        %v1021 = vsel %vm886, %v1004, 0
        %1023 = vmatprep.subr.bf16.mxu0 0
        %1024 = vmatpush1.bf16.msra.mxu0 0
        %1025 = vmatprep.subr.bf16.mxu0 0
        %1026 = vmatpush1.bf16.msra.mxu0 0
        %1027 = vmatprep.subr.bf16.mxu0 0
        %1028 = vmatpush1.bf16.msra.mxu0 0
        %1029 = vmatprep.subr.bf16.mxu0 0
        %1030 = vmatpush1.bf16.msra.mxu0 0
        %1031 = vmatprep.subr.bf16.mxu0 0
        %1032 = vmatpush1.bf16.msra.mxu0 0
        %1033 = vmatprep.subr.bf16.mxu0 0
        %1034 = vmatpush1.bf16.msra.mxu0 0
        %1035 = vmatprep.subr.bf16.mxu0 0
        %1036 = vmatpush1.bf16.msra.mxu0 0
        %1037 = vmatprep.subr.bf16.mxu0 0
        %1038 = vmatpush1.bf16.msra.mxu0 %v1018
        %1039 = vmatprep.subr.bf16.mxu0 0
        %1040 = vmatpush2.bf16.msra.mxu0 0
        %1041 = vmatprep.subr.bf16.mxu0 0
        %1042 = vmatpush2.bf16.msra.mxu0 0
        %1043 = vmatprep.subr.bf16.mxu0 0
        %1044 = vmatpush2.bf16.msra.mxu0 0
        %1045 = vmatprep.subr.bf16.mxu0 0
        %1046 = vmatpush2.bf16.msra.mxu0 0
        %1047 = vmatprep.subr.bf16.mxu0 0
        %1048 = vmatpush2.bf16.msra.mxu0 0
        %1049 = vmatprep.subr.bf16.mxu0 0
        %1050 = vmatpush2.bf16.msra.mxu0 0
        %1051 = vmatprep.subr.bf16.mxu0 0
        %1052 = vmatpush2.bf16.msra.mxu0 0
        %1053 = vmatprep.subr.bf16.mxu0 0
        %1054 = vmatpush2.bf16.msra.mxu0 0
        %1055 = vmatprep.mubr.bf16.mxu0 0
        %1056 = vmatmul.mubr.bf16.gmra.mxu0 %v1021
        %v1057 = vpop.f32.mrf.mxu0
        %v1058 = vadd.f32 %v1012, %v1057
        %v1059 = vpop.f32.mrf.mxu0
        %v1060 = vpop.f32.mrf.mxu0
        %v1061 = vadd.f32 %v1012, %v1060
        %v1062 = vpop.f32.mrf.mxu0
        %1063 = vdwg.mxu0
        %v1064 = vxor.u32 %v1058, 2147483648
        %v1065 = vxor.u32 %v1061, 2147483648
        %v1066 = vmul.f32 %v1064, 1.442695
        %v1067 = vpow.pop %v1066
        %v1068 = vmul.f32 %v1065, 1.442695
        %v1069 = vpow.pop %v1068
        %v1070 = vadd.f32 %v1067, 1.0
        %v1071 = vadd.f32 %v1069, 1.0
        %v1072 = vrcp.pop %v1070
        %v1073 = vmul.f32 1.0, %v1072
        %v1074 = vrcp.pop %v1071
        %v1075 = vmul.f32 1.0, %v1074
        %1076 = vst [vmem:[%s427] sm:$0xff] %v1073
        %1077 = vst [vmem:[%s427 + $0x8] sm:$0xff] %v1075
      $region80: #{gnn_forward.1} parent=67 // pred_fallthru
        _
      %s1078 = smul.u32 2, %s28
      %p1079 = scmp.lt.s32.totalorder %s1078, 1
      %s1080 = scalar_select %p1079, %s1078, 1
      %s1081 = smul.addr %s1080, 8
      %s1082 = scalar_lea.vmem %s12, %s1081
      // Predicated region
      $region81: #{gnn_forward.1} parent=67 // pred_check
        %p1083 = pneg %p310
      $region82: #{gnn_forward.1} parent=67 // pred_check_branch
        %1085 = sbr.rel (%p1083) target = $region84
      $region83: #{gnn_forward.1} parent=67 // pred_region
        %s1086 = smul.u32 2, %s28
      $region84: #{gnn_forward.1} parent=67 // pred_fallthru
        _
      // Predicated region
      $region85: #{gnn_forward.1} parent=67 // pred_check
        %p1087 = pneg %p310
      $region86: #{gnn_forward.1} parent=67 // pred_check_branch
        %1089 = sbr.rel (%p1087) target = $region88
      $region87: #{gnn_forward.1} parent=67 // pred_region
        %s1090 = smul.u32 2, %s28
        %p1091 = scmp.lt.s32.totalorder %s1090, 1
        %s1092 = scalar_select %p1091, %s1090, 1
        %s1093 = smul.addr %s1092, 8
        %s1094 = scalar_lea.vmem %s12, %s1093
      $region88: #{gnn_forward.1} parent=67 // pred_fallthru
        _
    $region68: #{gnn_forward.1} parent=5 // pred_fallthru
      _
    %p1095 = scmp.le.s32.totalorder 2, %s18
    // Predicated region
    $region89: #{gnn_forward.1} parent=5 // pred_check
      %p1096 = pneg %p1095
    $region90: #{gnn_forward.1} parent=5 // pred_check_branch
      %1098 = sbr.rel (%p1096) target = $region92
    $region91: #{gnn_forward.1} parent=5 // pred_region
      %s1099 = ssub.s32 %s18, 2
    $region92: #{gnn_forward.1} parent=5 // pred_fallthru
      _
  $region6: #{gnn_forward.1} parent=0 // loop_footer
    %s22 = sadd.s32 1, %s18
  $region7: #{gnn_forward.1} parent=0 // loop_footer_branch
    %17 = sbr.rel target = $region3
  $region8: #{gnn_forward.1} parent=0 // loop_exit
    _

</llo_original>
